<compile_context>
chip_gen: v7x
topology: tpu7x:2x2x1
jax: 0.10.0
libtpu: 0.0.40
codegen_flags: <defaults>
</compile_context>

<pallas_src>
import functools

import jax
import jax.numpy as jnp
from jax.experimental import pallas as pl
from jax.experimental.pallas import tpu as pltpu

_LANES = 128


def _msae_kernel(pre_ref, true_ref, out_ref, *, acc_rows, n_chunks, unroll,
                 tile_rows, total_rows, num_tiles, tiles_per_split,
                 mse_w, mae_w):
    s = pl.program_id(0)          # TensorCore split (parallel axis)
    t = pl.program_id(1)          # reduction axis within the split

    @pl.when(t == 0)
    def _init():
        out_ref[...] = jnp.zeros_like(out_ref)

    g = s * tiles_per_split + t   # virtual (unclamped) tile id

    def accumulate(masked):
        def one_chunk(c, acc):
            r0 = pl.multiple_of(c * acc_rows, acc_rows)
            p = pre_ref[pl.ds(r0, acc_rows), :].astype(jnp.float32)
            q = true_ref[pl.ds(r0, acc_rows), :].astype(jnp.float32)
            d = p - q
            if masked:
                # Rows at/after total_rows are block padding past the array
                # end or a clamped duplicate tile -> contribute exactly 0.
                # int32 row ids are safe below ~2.7e11 total elements.
                row = (g * tile_rows + r0) + jax.lax.broadcasted_iota(
                    jnp.int32, (acc_rows, _LANES), 0)
                d = jnp.where(row < total_rows, d, 0.0)
            a = jnp.abs(d)
            return acc + a * (mse_w * a + mae_w)   # == mse_w*d^2 + mae_w*|d|

        def body(i, acc):
            base = i * unroll
            for u in range(unroll):                # manual unroll
                acc = one_chunk(base + u, acc)
            return acc

        acc = jax.lax.fori_loop(
            0, n_chunks // unroll, body,
            jnp.zeros((acc_rows, _LANES), jnp.float32))
        out_ref[...] += acc

    is_tail = g >= num_tiles - 1   # last real tile or clamped duplicate

    @pl.when(jnp.logical_not(is_tail))
    def _steady():
        accumulate(masked=False)

    @pl.when(is_tail)
    def _tail():
        accumulate(masked=True)


def _row_unit(dtype):
    # Sublane packing unit for the row (second-to-last) dimension.
    return {4: 8, 2: 16, 1: 32}.get(jnp.dtype(dtype).itemsize, 8)


def _device_kind():
    try:
        return jax.devices()[0].device_kind.lower()
    except Exception:
        return ""


def msae_loss(y_pre, y_true, mse_w=1.0, mae_w=1.0, *, tile_rows=None,
              num_splits=None):
    assert y_pre.shape == y_true.shape, "y_pre / y_true must match"
    n_elems = y_pre.size
    kind = _device_kind()

    if num_splits is None:
        num_splits = 2 if "v7" in kind else 1       # only v7x has 2 TCs/chip
    if tile_rows is None:
        tile_rows = 4096 if "v5" in kind else 8192  # stay under scoped VMEM

    unit = max(_row_unit(y_pre.dtype), _row_unit(y_true.dtype), 8)
    pad_to = unit * _LANES

    pre_flat = jnp.ravel(y_pre)
    true_flat = jnp.ravel(y_true)

    tail_sum = jnp.float32(0.0)
    n_main = (n_elems // pad_to) * pad_to
    if n_main == 0:
        # Tiny input: pad up to a single aligned row group (negligible cost;
        # padded elements are 0 in both inputs -> contribute 0).
        n_pad = pad_to - n_elems
        pre_flat = jnp.pad(pre_flat, (0, n_pad))
        true_flat = jnp.pad(true_flat, (0, n_pad))
        n_main = pad_to
    elif n_main < n_elems:
        # Unaligned: reduce only the small tail (< unit*128 elements) in plain
        # JAX and run the kernel on the aligned prefix -- avoids materializing
        # a full padded copy of both inputs in HBM.
        dt = (pre_flat[n_main:].astype(jnp.float32)
              - true_flat[n_main:].astype(jnp.float32))
        at = jnp.abs(dt)
        tail_sum = jnp.sum(at * (mse_w * at + mae_w))
        pre_flat = pre_flat[:n_main]
        true_flat = true_flat[:n_main]

    rows = n_main // _LANES                 # multiple of `unit`
    pre2d = pre_flat.reshape(rows, _LANES)
    true2d = true_flat.reshape(rows, _LANES)

    # Effective tile: large, capped by the array, sublane-aligned.
    tr = max(unit, min(int(tile_rows), rows))
    tr = (tr // unit) * unit

    acc_rows = 64                           # resident accumulator rows
    while tr % acc_rows:
        acc_rows //= 2                      # ends at >= 8 (tr % 8 == 0)
    n_chunks = tr // acc_rows
    unroll = 8
    while n_chunks % unroll:
        unroll //= 2

    num_tiles = pl.cdiv(rows, tr)
    n_split = max(1, min(int(num_splits), num_tiles))
    tiles_per_split = pl.cdiv(num_tiles, n_split)

    def in_map(s, t):
        g = s * tiles_per_split + t
        return (jnp.minimum(g, num_tiles - 1), 0)   # clamp duplicate tail tiles

    kernel = functools.partial(
        _msae_kernel, acc_rows=acc_rows, n_chunks=n_chunks, unroll=unroll,
        tile_rows=tr, total_rows=rows, num_tiles=num_tiles,
        tiles_per_split=tiles_per_split, mse_w=float(mse_w), mae_w=float(mae_w))

    out_bytes = n_split * acc_rows * _LANES * 4
    cost = pl.CostEstimate(
        flops=5 * n_elems, transcendentals=0,
        bytes_accessed=int(y_pre.nbytes) + int(y_true.nbytes) + out_bytes)

    grid_spec = pltpu.PrefetchScalarGridSpec(
        num_scalar_prefetch=0,
        grid=(n_split, tiles_per_split),
        in_specs=[
            pl.BlockSpec((tr, _LANES), in_map),
            pl.BlockSpec((tr, _LANES), in_map),
        ],
        out_specs=pl.BlockSpec((acc_rows, _LANES), lambda s, t: (s, 0)),
    )

    # Leading-axis semantics: CORE_PARALLEL shards the splits across the two
    # TensorCores on v7x (plain "parallel" may leave a core idle); single-TC
    # chips use one split and a plain serial axis.
    if n_split > 1 and "v7" in kind:
        axis0_candidates = [getattr(pltpu, "CORE_PARALLEL", "parallel"),
                            "parallel"]
    elif n_split > 1:
        axis0_candidates = ["parallel"]
    else:
        axis0_candidates = ["arbitrary"]

    out_shape = jax.ShapeDtypeStruct((n_split * acc_rows, _LANES), jnp.float32)
    partials = None
    last_err = None
    for axis0 in axis0_candidates:
        try:
            partials = pl.pallas_call(
                kernel,
                out_shape=out_shape,
                grid_spec=grid_spec,
                compiler_params=pltpu.CompilerParams(
                    dimension_semantics=(axis0, "arbitrary")),
                cost_estimate=cost,
            )(pre2d, true2d)
            break
        except Exception as err:   # fallback if CORE_PARALLEL is unsupported
            last_err = err
    if partials is None:
        raise last_err

    # Final cross-lane reduce + mean, once, in plain JAX.
    return (jnp.sum(partials) + tail_sum) / jnp.float32(n_elems)


def _msae_ref(y_pre, y_true, mse_w=1.0, mae_w=1.0):
    diff = y_pre.astype(jnp.float32) - y_true.astype(jnp.float32)
    return mse_w * jnp.mean(diff * diff) + mae_w * jnp.mean(jnp.abs(diff))


if __name__ == "__main__":
    key = jax.random.PRNGKey(0)
    k1, k2, k3, k4, k5, k6 = jax.random.split(key, 6)

    # NCHW-shaped example: batch=2, channels=4, spatial=16x16 (aligned path).
    y_pre = jax.random.uniform(k1, (2, 4, 16, 16), dtype=jnp.float32)
    y_true = jax.random.uniform(k2, (2, 4, 16, 16), dtype=jnp.float32,
                                minval=-0.3, maxval=1.3)
    loss = jax.block_until_ready(msae_loss(y_pre, y_true, mse_w=1.0, mae_w=1.0))
    ref = _msae_ref(y_pre, y_true, 1.0, 1.0)
    assert jnp.allclose(loss, ref, rtol=1e-5, atol=1e-6), (loss, ref)

    # Unaligned shape: exercises the plain-JAX tail reduction and the masked
    # tail-tile path inside the kernel.
    y_pre2 = jax.random.normal(k3, (3, 5, 17, 19), dtype=jnp.float32)
    y_true2 = jax.random.normal(k4, (3, 5, 17, 19), dtype=jnp.float32)
    loss2 = jax.block_until_ready(
        msae_loss(y_pre2, y_true2, mse_w=0.7, mae_w=1.3, tile_rows=16,
                  num_splits=2))
    ref2 = _msae_ref(y_pre2, y_true2, 0.7, 1.3)
    assert jnp.allclose(loss2, ref2, rtol=1e-5, atol=1e-6), (loss2, ref2)

    # Uneven split: odd tile count with 2 splits exercises the clamped
    # duplicate-tile path plus the last ragged tile.
    y_pre3 = jax.random.normal(k5, (2, 3, 50, 50), dtype=jnp.float32)
    y_true3 = jax.random.normal(k6, (2, 3, 50, 50), dtype=jnp.float32)
    loss3 = jax.block_until_ready(
        msae_loss(y_pre3, y_true3, mse_w=1.2, mae_w=0.5, tile_rows=48,
                  num_splits=2))
    ref3 = _msae_ref(y_pre3, y_true3, 1.2, 0.5)
    assert jnp.allclose(loss3, ref3, rtol=1e-5, atol=1e-6), (loss3, ref3)

    print("KERNEL_OK")
</pallas_src>

<mosaic_0001>
module attributes {stable_mosaic.version = 11 : i64} {
  func.func @_msae_kernel(%arg0: i32, %arg1: i32, %arg2: memref<16x128xf32, #tpu.memory_space<vmem>>, %arg3: memref<16x128xf32, #tpu.memory_space<vmem>>, %arg4: memref<16x128xf32, #tpu.memory_space<vmem>>) attributes {dimension_semantics = [#tpu.dimension_semantics<arbitrary>, #tpu.dimension_semantics<arbitrary>], iteration_bounds = array<i64: 1, 1>, scalar_prefetch = 0 : i64, scratch_operands = 0 : i64, tpu.core_type = #tpu.core_type<tc>, window_params = [{transform_indices = @transform_0, window_bounds = array<i64: 16, 128>}, {transform_indices = @transform_1, window_bounds = array<i64: 16, 128>}, {transform_indices = @transform_2, window_bounds = array<i64: 16, 128>}]} {
    %c0_i32 = arith.constant 0 : i32
    %0 = arith.cmpi eq, %arg1, %c0_i32 : i32
    %1 = arith.extui %0 : i1 to i32
    %c0_i32_0 = arith.constant 0 : i32
    %2 = arith.cmpi ne, %1, %c0_i32_0 : i32
    scf.if %2 {
      %cst = arith.constant 0.000000e+00 : f32
      %11 = vector.broadcast %cst : f32 to vector<16x128xf32>
      %c0 = arith.constant 0 : index
      %c0_4 = arith.constant 0 : index
      %12 = vector.load %arg4[%c0, %c0_4] : memref<16x128xf32, #tpu.memory_space<vmem>>, vector<16x128xf32>
      tpu.vector_store %arg4[%c0, %c0_4], %11 {strides = array<i32>} : memref<16x128xf32, #tpu.memory_space<vmem>>, vector<16x128xf32>,
    } else {
    }
    %c1_i32 = arith.constant 1 : i32
    %3 = arith.muli %arg0, %c1_i32 : i32
    %4 = arith.addi %3, %arg1 : i32
    %c0_i32_1 = arith.constant 0 : i32
    %5 = arith.cmpi sge, %4, %c0_i32_1 : i32
    %true = arith.constant true
    %6 = arith.xori %5, %true : i1
    %7 = arith.extui %6 : i1 to i32
    %c0_i32_2 = arith.constant 0 : i32
    %8 = arith.cmpi ne, %7, %c0_i32_2 : i32
    scf.if %8 {
      %cst = arith.constant 0.000000e+00 : f32
      %11 = vector.broadcast %cst : f32 to vector<16x128xf32>
      %c0_i32_4 = arith.constant 0 : i32
      %c1_i32_5 = arith.constant 1 : i32
      %12 = arith.muli %c0_i32_4, %c1_i32_5 : i32
      %c0_i32_6 = arith.constant 0 : i32
      %13 = arith.addi %12, %c0_i32_6 : i32
      %c16_i32 = arith.constant 16 : i32
      %14 = arith.muli %13, %c16_i32 : i32
      %15 = tpu.assume_multiple %14, 16 : i32
      %16 = arith.index_cast %15 : i32 to index
      %c0 = arith.constant 0 : index
      %17 = vector.load %arg2[%16, %c0] : memref<16x128xf32, #tpu.memory_space<vmem>>, vector<16x128xf32>
      %18 = arith.index_cast %15 : i32 to index
      %c0_7 = arith.constant 0 : index
      %19 = vector.load %arg3[%18, %c0_7] : memref<16x128xf32, #tpu.memory_space<vmem>>, vector<16x128xf32>
      %20 = arith.subf %17, %19 : vector<16x128xf32>
      %21 = math.absf %20 : vector<16x128xf32>
      %cst_8 = arith.constant 1.000000e+00 : f32
      %22 = vector.broadcast %cst_8 : f32 to vector<16x128xf32>
      %23 = arith.mulf %22, %21 : vector<16x128xf32>
      %cst_9 = arith.constant 1.000000e+00 : f32
      %24 = vector.broadcast %cst_9 : f32 to vector<16x128xf32>
      %25 = arith.addf %23, %24 : vector<16x128xf32>
      %26 = arith.mulf %21, %25 : vector<16x128xf32>
      %27 = arith.addf %11, %26 : vector<16x128xf32>
      %c1_i32_10 = arith.constant 1 : i32
      %c0_11 = arith.constant 0 : index
      %c0_12 = arith.constant 0 : index
      %28 = vector.load %arg4[%c0_11, %c0_12] : memref<16x128xf32, #tpu.memory_space<vmem>>, vector<16x128xf32>
      %29 = arith.addf %28, %27 : vector<16x128xf32>
      %c0_13 = arith.constant 0 : index
      %c0_14 = arith.constant 0 : index
      %30 = vector.load %arg4[%c0_13, %c0_14] : memref<16x128xf32, #tpu.memory_space<vmem>>, vector<16x128xf32>
      tpu.vector_store %arg4[%c0_13, %c0_14], %29 {strides = array<i32>} : memref<16x128xf32, #tpu.memory_space<vmem>>, vector<16x128xf32>,
    } else {
    }
    %9 = arith.extui %5 : i1 to i32
    %c0_i32_3 = arith.constant 0 : i32
    %10 = arith.cmpi ne, %9, %c0_i32_3 : i32
    scf.if %10 {
      %cst = arith.constant 0.000000e+00 : f32
      %11 = vector.broadcast %cst : f32 to vector<16x128xf32>
      %c0_i32_4 = arith.constant 0 : i32
      %c1_i32_5 = arith.constant 1 : i32
      %12 = arith.muli %c0_i32_4, %c1_i32_5 : i32
      %c0_i32_6 = arith.constant 0 : i32
      %13 = arith.addi %12, %c0_i32_6 : i32
      %c16_i32 = arith.constant 16 : i32
      %14 = arith.muli %13, %c16_i32 : i32
      %15 = tpu.assume_multiple %14, 16 : i32
      %16 = arith.index_cast %15 : i32 to index
      %c0 = arith.constant 0 : index
      %17 = vector.load %arg2[%16, %c0] : memref<16x128xf32, #tpu.memory_space<vmem>>, vector<16x128xf32>
      %18 = arith.index_cast %15 : i32 to index
      %c0_7 = arith.constant 0 : index
      %19 = vector.load %arg3[%18, %c0_7] : memref<16x128xf32, #tpu.memory_space<vmem>>, vector<16x128xf32>
      %20 = arith.subf %17, %19 : vector<16x128xf32>
      %c16_i32_8 = arith.constant 16 : i32
      %21 = arith.muli %4, %c16_i32_8 : i32
      %22 = arith.addi %21, %15 : i32
      %23 = tpu.iota {dimensions = array<i32: 0>} : vector<16x128xi32>
      %24 = vector.broadcast %22 : i32 to vector<16x128xi32>
      %25 = arith.addi %24, %23 : vector<16x128xi32>
      %c16_i32_9 = arith.constant 16 : i32
      %26 = vector.broadcast %c16_i32_9 : i32 to vector<16x128xi32>
      %27 = arith.cmpi slt, %25, %26 : vector<16x128xi32>
      %cst_10 = arith.constant 0.000000e+00 : f32
      %28 = vector.broadcast %cst_10 : f32 to vector<16x128xf32>
      %29 = arith.select %27, %20, %28 : vector<16x128xi1>, vector<16x128xf32>
      %30 = math.absf %29 : vector<16x128xf32>
      %cst_11 = arith.constant 1.000000e+00 : f32
      %31 = vector.broadcast %cst_11 : f32 to vector<16x128xf32>
      %32 = arith.mulf %31, %30 : vector<16x128xf32>
      %cst_12 = arith.constant 1.000000e+00 : f32
      %33 = vector.broadcast %cst_12 : f32 to vector<16x128xf32>
      %34 = arith.addf %32, %33 : vector<16x128xf32>
      %35 = arith.mulf %30, %34 : vector<16x128xf32>
      %36 = arith.addf %11, %35 : vector<16x128xf32>
      %c1_i32_13 = arith.constant 1 : i32
      %c0_14 = arith.constant 0 : index
      %c0_15 = arith.constant 0 : index
      %37 = vector.load %arg4[%c0_14, %c0_15] : memref<16x128xf32, #tpu.memory_space<vmem>>, vector<16x128xf32>
      %38 = arith.addf %37, %36 : vector<16x128xf32>
      %c0_16 = arith.constant 0 : index
      %c0_17 = arith.constant 0 : index
      %39 = vector.load %arg4[%c0_16, %c0_17] : memref<16x128xf32, #tpu.memory_space<vmem>>, vector<16x128xf32>
      tpu.vector_store %arg4[%c0_16, %c0_17], %38 {strides = array<i32>} : memref<16x128xf32, #tpu.memory_space<vmem>>, vector<16x128xf32>,
    } else {
    }
    return
  }
  func.func @transform_0(%arg0: i32, %arg1: i32) -> (i32, i32) {
    %c1_i32 = arith.constant 1 : i32
    %0 = arith.muli %arg0, %c1_i32 : i32
    %1 = arith.addi %0, %arg1 : i32
    %c0_i32 = arith.constant 0 : i32
    %2 = arith.minsi %1, %c0_i32 : i32
    %c0_i32_0 = arith.constant 0 : i32
    %c0_i32_1 = arith.constant 0 : i32
    return %2, %c0_i32_0 : i32, i32
  }
  func.func @transform_1(%arg0: i32, %arg1: i32) -> (i32, i32) {
    %c1_i32 = arith.constant 1 : i32
    %0 = arith.muli %arg0, %c1_i32 : i32
    %1 = arith.addi %0, %arg1 : i32
    %c0_i32 = arith.constant 0 : i32
    %2 = arith.minsi %1, %c0_i32 : i32
    %c0_i32_0 = arith.constant 0 : i32
    %c0_i32_1 = arith.constant 0 : i32
    return %2, %c0_i32_0 : i32, i32
  }
  func.func @transform_2(%arg0: i32, %arg1: i32) -> (i32, i32) {
    %c0_i32 = arith.constant 0 : i32
    %c0_i32_0 = arith.constant 0 : i32
    return %arg0, %c0_i32 : i32, i32
  }
}

</mosaic_0001>

<llo_original>
// kernel: tpu_custom_call.1
$region0: #{tpu_custom_call.1}
  #allocation0 [shape = 'u32[]', space=smem, size = 0x4, offset = 0x4, fixed_abs, tag = 'smem constant byte address 0x4 - core index']
  #allocation1 [shape = 'u32[144,128]{1,0:T(1,128)}', space=vmem, size = 0x12000, scoped, tag = 'internal scratch']
  %s0 = inlined_call_operand.hbm [shape: f32[16,128], index: 0, kind: input, shape index: {}]
  %s1 = inlined_call_operand.hbm [shape: f32[16,128], index: 1, kind: input, shape index: {}]
  %s2 = inlined_call_operand.hbm [shape: f32[16,128], index: 2, kind: output, shape index: {}]
  %s3 = sld [smem:[#allocation0]]
  $region38: #{tpu_custom_call.1} parent=0
    _
  %s5 = ssub.s32 1, %s3
  %s6 = scalar_select 0, %s5, %s3
  $region1: #{tpu_custom_call.1} parent=0
    #allocation2 [shape = 'u8[8192]{0}', space=vmem, size = 0x2000, scoped, tag = 'input window, operand 0, single buffered']
    #allocation3 [shape = 's32[1]{0}', space=sflag, size = 0x4, scoped, tag = 'scoped memory for tpu_custom_call.1']
    #allocation4 [shape = 's32[1]{0}', space=sflag, size = 0x4, scoped, tag = 'scoped memory for tpu_custom_call.1']
    #allocation5 [shape = 'u8[8192]{0}', space=vmem, size = 0x2000, scoped, tag = 'input window, operand 1, single buffered']
    #allocation6 [shape = 's32[1]{0}', space=sflag, size = 0x4, scoped, tag = 'scoped memory for tpu_custom_call.1']
    #allocation7 [shape = 'u8[8192]{0}', space=vmem, size = 0x2000, scoped, tag = 'output window, operand 0, single buffered']
    %7 = vsyncpa [#allocation3], 0
    %8 = vsyncpa [#allocation6], 0
    %9 = vsyncpa [#allocation4], 0
    // Predicated region
    $region2: #{tpu_custom_call.1} parent=1 // pred_check
      _
    $region3: #{tpu_custom_call.1} parent=1 // pred_check_branch
      %11 = sbr.rel (0) target = $region5
    $region4: #{tpu_custom_call.1} parent=1 // pred_region
      %s12 = sadd.s32 0, 0
      %p13 = scmp.lt.s32.totalorder %s12, 0
      %s14 = scalar_select %p13, %s12, 0
      %s15 = smul.u32 2, %s14
      %s17 = ssub.s32 256, 256
      %18 = vsyncadd [#allocation3], %s17
      %s19 = smul.addr %s15, 128
      %s20 = scalar_lea.hbm %s0, %s19
      %s21 = sshll.u32 [#allocation2], 4
      %s22 = int_to_ptr.vmem [resolvable:$true] %s21
      %27 = dma.hbm_to_vmem [thread:$0]  %s20, 256, %s22, [#allocation3], 128, 128, 8
    $region5: #{tpu_custom_call.1} parent=1 // pred_fallthru
      _
    // Predicated region
    $region6: #{tpu_custom_call.1} parent=1 // pred_check
      _
    $region7: #{tpu_custom_call.1} parent=1 // pred_check_branch
      %29 = sbr.rel (0) target = $region9
    $region8: #{tpu_custom_call.1} parent=1 // pred_region
      %s30 = sadd.s32 0, 0
      %p31 = scmp.lt.s32.totalorder %s30, 0
      %s32 = scalar_select %p31, %s30, 0
      %s33 = smul.u32 2, %s32
      %s35 = ssub.s32 256, 256
      %36 = vsyncadd [#allocation6], %s35
      %s37 = smul.addr %s33, 128
      %s38 = scalar_lea.hbm %s1, %s37
      %s39 = sshll.u32 [#allocation5], 4
      %s40 = int_to_ptr.vmem [resolvable:$true] %s39
      %45 = dma.hbm_to_vmem [thread:$0]  %s38, 256, %s40, [#allocation6], 128, 128, 8
    $region9: #{tpu_custom_call.1} parent=1 // pred_fallthru
      _
    // Predicated region
    $region10: #{tpu_custom_call.1} parent=1 // pred_check
      _
    $region11: #{tpu_custom_call.1} parent=1 // pred_check_branch
      %47 = sbr.rel (0) target = $region13
    $region12: #{tpu_custom_call.1} parent=1 // pred_region
      %48 = dma.done [#allocation3], 256
    $region13: #{tpu_custom_call.1} parent=1 // pred_fallthru
      _
    // Predicated region
    $region14: #{tpu_custom_call.1} parent=1 // pred_check
      _
    $region15: #{tpu_custom_call.1} parent=1 // pred_check_branch
      %50 = sbr.rel (0) target = $region17
    $region16: #{tpu_custom_call.1} parent=1 // pred_region
      %51 = dma.done [#allocation6], 256
    $region17: #{tpu_custom_call.1} parent=1 // pred_fallthru
      _
    %s52 = sadd.s32 0, 0
    %p53 = scmp.lt.s32.totalorder %s52, 0
    %s54 = scalar_select %p53, %s52, 0
    %s55 = smul.u32 2, %s54
    %s56 = sadd.s32 0, 0
    %p57 = scmp.lt.s32.totalorder %s56, 0
    %s58 = scalar_select %p57, %s56, 0
    %s59 = smul.u32 2, %s58
    %p60 = scmp.eq.s32.totalorder 0, 0
    // Predicated region
    $region18: #{tpu_custom_call.1} parent=1 // pred_check
      %p61 = pneg %p60
    $region19: #{tpu_custom_call.1} parent=1 // pred_check_branch
      %63 = sbr.rel (%p61) target = $region21
    $region20: #{tpu_custom_call.1} parent=1 // pred_region
      %64 = vst [vmem:[#allocation7] sm:$0xff] 0.0
      %65 = vst [vmem:[#allocation7 + $0x8] sm:$0xff] 0.0
    $region21: #{tpu_custom_call.1} parent=1 // pred_fallthru
      _
    %s66 = sadd.s32 0, 0
    %p67 = scmp.ge.s32.totalorder %s66, 0
    %p68 = scmp.lt.s32.totalorder %s66, 0
    // Predicated region
    $region22: #{tpu_custom_call.1} parent=1 // pred_check
      %p69 = pneg %p68
    $region23: #{tpu_custom_call.1} parent=1 // pred_check_branch
      %71 = sbr.rel (%p69) target = $region25
    $region24: #{tpu_custom_call.1} parent=1 // pred_region
      %v72 = vld [vmem:[#allocation2] sm:$0xff]
      %v73 = vld [vmem:[#allocation2 + $0x8] sm:$0xff]
      %v74 = vld [vmem:[#allocation5] sm:$0xff]
      %v75 = vld [vmem:[#allocation5 + $0x8] sm:$0xff]
      %v76 = vsub.f32 %v72, %v74
      %v77 = vsub.f32 %v73, %v75
      %v78 = vand.u32 2147483647, %v76
      %v79 = vand.u32 2147483647, %v77
      %v80 = vadd.f32 %v78, 1.0
      %v81 = vadd.f32 %v79, 1.0
      %v82 = vmul.f32 %v78, %v80
      %v83 = vmul.f32 %v79, %v81
      %v84 = vadd.f32 %v82, 0.0
      %v85 = vadd.f32 %v83, 0.0
      %v86 = vld [vmem:[#allocation7] sm:$0xff]
      %v87 = vld [vmem:[#allocation7 + $0x8] sm:$0xff]
      %v88 = vadd.f32 %v86, %v84
      %v89 = vadd.f32 %v87, %v85
      %90 = vst [vmem:[#allocation7] sm:$0xff] %v88
      %91 = vst [vmem:[#allocation7 + $0x8] sm:$0xff] %v89
    $region25: #{tpu_custom_call.1} parent=1 // pred_fallthru
      _
    // Predicated region
    $region26: #{tpu_custom_call.1} parent=1 // pred_check
      %p92 = pneg %p67
    $region27: #{tpu_custom_call.1} parent=1 // pred_check_branch
      %94 = sbr.rel (%p92) target = $region29
    $region28: #{tpu_custom_call.1} parent=1 // pred_region
      %v95 = vld [vmem:[#allocation2] sm:$0xff]
      %v96 = vld [vmem:[#allocation2 + $0x8] sm:$0xff]
      %v97 = vld [vmem:[#allocation5] sm:$0xff]
      %v98 = vld [vmem:[#allocation5 + $0x8] sm:$0xff]
      %v99 = vsub.f32 %v95, %v97
      %v100 = vsub.f32 %v96, %v98
      %s101 = smul.u32 %s66, 16
      %s102 = sadd.s32 %s101, 0
      %v103 = vlaneseq
      %v104 = vshrl.u32 %v103, 7
      %v105 = vadd.s32 %v104, 8
      %v106 = vstv %s102
      %v107 = vadd.s32 %v106, %v104
      %v108 = vadd.s32 %v106, %v105
      %vm109 = vcmp.lt.s32.totalorder %v107, 16
      %vm110 = vcmp.lt.s32.totalorder %v108, 16
      %v111 = vsel %vm109, %v99, 0.0
      %v112 = vsel %vm110, %v100, 0.0
      %v113 = vand.u32 2147483647, %v111
      %v114 = vand.u32 2147483647, %v112
      %v115 = vadd.f32 %v113, 1.0
      %v116 = vadd.f32 %v114, 1.0
      %v117 = vmul.f32 %v113, %v115
      %v118 = vmul.f32 %v114, %v116
      %v119 = vadd.f32 %v117, 0.0
      %v120 = vadd.f32 %v118, 0.0
      %v121 = vld [vmem:[#allocation7] sm:$0xff]
      %v122 = vld [vmem:[#allocation7 + $0x8] sm:$0xff]
      %v123 = vadd.f32 %v121, %v119
      %v124 = vadd.f32 %v122, %v120
      %125 = vst [vmem:[#allocation7] sm:$0xff] %v123
      %126 = vst [vmem:[#allocation7 + $0x8] sm:$0xff] %v124
    $region29: #{tpu_custom_call.1} parent=1 // pred_fallthru
      _
    // Predicated region
    $region30: #{tpu_custom_call.1} parent=1 // pred_check
      _
    $region31: #{tpu_custom_call.1} parent=1 // pred_check_branch
      %128 = sbr.rel (0) target = $region33
    $region32: #{tpu_custom_call.1} parent=1 // pred_region
      %s130 = ssub.s32 256, 256
      %131 = vsyncadd [#allocation4], %s130
      %s132 = sshll.u32 [#allocation7], 4
      %s133 = int_to_ptr.vmem [resolvable:$true] %s132
      %138 = dma.vmem_to_hbm [thread:$0]  %s133, 256, %s2, [#allocation4], 128, 128, 8
    $region33: #{tpu_custom_call.1} parent=1 // pred_fallthru
      _
    // Predicated region
    $region34: #{tpu_custom_call.1} parent=1 // pred_check
      _
    $region35: #{tpu_custom_call.1} parent=1 // pred_check_branch
      %140 = sbr.rel (0) target = $region37
    $region36: #{tpu_custom_call.1} parent=1 // pred_region
      %141 = dma.done [#allocation4], 256
    $region37: #{tpu_custom_call.1} parent=1 // pred_fallthru
      _
    %142 = vsyncpa [#allocation3], 1
    %143 = vsyncpa [#allocation6], 1
    %144 = vsyncpa [#allocation4], 1

</llo_original>
